<compile_context>
chip_gen: v7x
topology: tpu7x:2x2x1
jax: 0.10.0
libtpu: 0.0.40
codegen_flags: <defaults>
</compile_context>

<pallas_src>
import jax
import jax.numpy as jnp
import numpy as np
from jax.experimental import pallas as pl
from jax.experimental.pallas import tpu as pltpu

TARGETS = ['AlarmClock', 'Apple', 'BaseballBat', 'BasketBall', 'Bowl', 'GarbageCan',
           'HousePlant', 'Laptop', 'Mug', 'RemoteControl', 'SprayBottle',
           'Television', 'Vase']

D_ENC = 256                           # DETR encoder feature dim
BACKGROUND = float(len(TARGETS) + 1)  # 14.0, the "no object" label


def _embed_kernel(enc_ref,    # VMEM (bb, N, 256) bf16
                  idx_ref,    # VMEM (bb, N, 1)   i32  sort indices, -1 => background (zero row)
                  feat_out):  # VMEM (bb, N, 256) f32/bf16
    bb, n, _ = enc_ref.shape

    idx = idx_ref[...][..., 0]                                   # (bb, N) i32
    # Shared (1,N,N) iota; broadcast over bb in the compare (no per-batch copy).
    col = jax.lax.broadcasted_iota(jnp.int32, (1, n, n), 2)      # (1, N, N)
    # One-hot permutation rows.  idx == -1 (background) matches no column, so
    # the background mask is already folded in: those output rows are zero.
    perm = (idx[:, :, None] == col).astype(jnp.bfloat16)         # (bb, N, N)

    # Sort-gather via MXU: bf16 operands, f32 accumulate.
    # NOTE: exact because one-hot rows are exact in bf16 and the synthetic
    # detector outputs are bf16-exact; for real f32 DETR features keep f32
    # operands (precision=HIGHEST) or use a true gather.
    feat = jnp.einsum('bij,bjc->bic', perm, enc_ref[...],
                      preferred_element_type=jnp.float32)        # (bb, N, 256)
    feat_out[...] = feat.astype(feat_out.dtype)


def _pick_batch_block(B):
    """Largest divisor of B (<=16) that keeps >=2 grid steps (v7x megacore)."""
    best = 1
    for bb in range(1, min(B, 16) + 1):
        if B % bb == 0 and B // bb >= 2:
            best = bb
    return best


def detr_embed(encoder_features, scores, labels, boxes, target, *,
               batch_block=None, feature_out_dtype=jnp.float32):
    """Pallas implementation of DETREmbedder.embed_detection_results.

    encoder_features: (B, N, 256) f32/bf16
    scores/labels:    (B, N, 1)   f32
    boxes:            (B, N, 4)   f32
    target:           (B,)        int32  (goal_object_type_ind)
    batch_block:      batches per grid step (None = auto).
    """
    B, N, _ = encoder_features.shape
    bb = batch_block if batch_block is not None else _pick_batch_block(B)
    assert B % bb == 0, (B, bb)

    labels_1d = labels[..., 0]                                            # (B, N)
    sort_index = jnp.argsort(labels_1d, axis=1, stable=True).astype(jnp.int32)
    sorted_labels = jnp.take_along_axis(labels_1d, sort_index, axis=1)    # (B, N)
    is_bg = sorted_labels == BACKGROUND                                   # (B, N)

    # Fold background masking into the gather index: -1 never matches the
    # in-kernel one-hot column iota => all-zero output row.
    masked_idx = jnp.where(is_bg, jnp.int32(-1), sort_index)[..., None]   # (B, N, 1)

    # Feature stream goes to the kernel in bf16 (halves HBM read traffic; the
    # gather matmul runs in bf16 regardless).
    enc_bf16 = encoder_features.astype(jnp.bfloat16)

    # Per-step VMEM estimate (double-buffered in/out + perm/iota intermediates);
    # only raise the scoped limit if we exceed the smallest (v5e) default.
    out_itemsize = jnp.dtype(feature_out_dtype).itemsize
    est = 2 * bb * N * (D_ENC * 2 + 4)            # enc (bf16) + idx (i32), x2 buffers
    est += 2 * bb * N * D_ENC * out_itemsize      # output, x2 buffers
    est += bb * N * N * 2 + N * N * 4             # perm (bf16) + iota (i32)
    cp_kwargs = dict(dimension_semantics=("parallel",))
    if 2 * est > (16 << 20):
        cp_kwargs["vmem_limit_bytes"] = int(min(64 << 20, 2 * est))

    feat = pl.pallas_call(
        _embed_kernel,
        out_shape=jax.ShapeDtypeStruct((B, N, D_ENC), feature_out_dtype),
        grid_spec=pltpu.PrefetchScalarGridSpec(
            num_scalar_prefetch=0,
            grid=(B // bb,),
            in_specs=[
                pl.BlockSpec((bb, N, D_ENC), lambda b: (b, 0, 0)),
                pl.BlockSpec((bb, N, 1), lambda b: (b, 0, 0)),
            ],
            out_specs=pl.BlockSpec((bb, N, D_ENC), lambda b: (b, 0, 0)),
        ),
        compiler_params=pltpu.CompilerParams(**cp_kwargs),
    )(enc_bf16, masked_idx)

    # Tiny slab (scores/labels/boxes/indicator) handled in plain JAX: ~3 KB per
    # batch, not worth a narrow DMA stream + lane-sparse stores in the kernel.
    idx3 = sort_index[..., None]                                          # (B, N, 1)
    bg3 = is_bg[..., None]                                                # (B, N, 1)
    g_scores = jnp.where(bg3, 0.0, jnp.take_along_axis(scores, idx3, axis=1))
    g_labels = jnp.where(bg3, 0.0, jnp.take_along_axis(labels, idx3, axis=1))
    g_boxes = jnp.where(bg3, 0.0,
                        jnp.take_along_axis(boxes, jnp.broadcast_to(idx3, boxes.shape), axis=1))

    # Indicator on the post-masking labels (matches the PyTorch module).
    tgt = target.astype(g_labels.dtype)[:, None, None]
    indicator = (g_labels == tgt).astype(jnp.float32)

    return {
        "features": feat,
        "scores": g_scores,
        "labels": g_labels,
        "bboxes": g_boxes,
        "indicator": indicator,
        "target": target,
    }


def detr_embedder_forward(x, detector_outputs):
    """Mirrors DETREmbedder.forward; the detector call is a synthetic stand-in."""
    # TODO(synk): inference_detector / Resize(800) / 'bbox' postprocessor not
    #             translated; outputs come from the deterministic stand-in.
    enc, scores, labels, boxes = detector_outputs
    return detr_embed(enc, scores, labels, boxes, x["goal_object_type_ind"])


# ---------------- pure-JAX reference (for correctness check) -----------------
def embed_ref(enc, scores, labels, boxes, target):
    cat = jnp.concatenate([enc, scores, labels, boxes], axis=-1)
    sort_idx = jnp.argsort(labels[..., 0], axis=1, stable=True)
    g = jnp.take_along_axis(cat, sort_idx[..., None], axis=1)
    bg = g[..., 257:258] == BACKGROUND
    g = jnp.where(bg, 0.0, g)
    feats, sc, lb, bx = g[..., :256], g[..., 256:257], g[..., 257:258], g[..., -4:]
    ind = (lb == target[:, None, None].astype(jnp.float32)).astype(jnp.float32)
    return feats, sc, lb, bx, ind


if __name__ == "__main__":
    B, N = 2, 100                      # DETR uses 100 object queries
    key = jax.random.PRNGKey(0)
    k_img, k_feat, k_sc, k_lb, k_bx, k_tg = jax.random.split(key, 6)

    # bf16-exact synthetic values so the in-kernel bf16 permutation-matmul
    # gather (and the bf16 HBM transit of features) is exact.
    bf16_exact = lambda v: v.astype(jnp.bfloat16).astype(jnp.float32)

    x = {
        "rgb_lowres": jax.random.uniform(k_img, (B, 16, 16, 3), jnp.float32),  # NHWC (unused: detector stand-in)
        "goal_object_type_ind": jax.random.randint(k_tg, (B,), 0, len(TARGETS)).astype(jnp.int32),
    }

    # Deterministic stand-in for the DETR detector / postprocessor outputs.
    enc = bf16_exact(jax.random.normal(k_feat, (B, N, D_ENC), jnp.float32))
    scores = bf16_exact(jax.nn.sigmoid(jax.random.normal(k_sc, (B, N, 1), jnp.float32)))
    labels = jax.random.randint(k_lb, (B, N, 1), 0, len(TARGETS) + 2).astype(jnp.float32)
    boxes = bf16_exact(jax.random.uniform(k_bx, (B, N, 4), jnp.float32, minval=0.0, maxval=224.0))

    out = detr_embedder_forward(x, (enc, scores, labels, boxes))
    jax.block_until_ready(out)

    ref = embed_ref(enc, scores, labels, boxes, x["goal_object_type_ind"])
    for got, want in zip((out["features"], out["scores"], out["labels"],
                          out["bboxes"], out["indicator"]), ref):
        np.testing.assert_allclose(np.asarray(got), np.asarray(want), atol=1e-6, rtol=1e-6)

    print("KERNEL_OK")
</pallas_src>

<mosaic_0001>
module attributes {stable_mosaic.version = 11 : i64} {
  func.func @_embed_kernel(%arg0: i32, %arg1: memref<1x100x256xbf16, #tpu.memory_space<vmem>>, %arg2: memref<1x100x1xi32, #tpu.memory_space<vmem>>, %arg3: memref<1x100x256xf32, #tpu.memory_space<vmem>>) attributes {dimension_semantics = [#tpu.dimension_semantics<parallel>], iteration_bounds = array<i64: 2>, scalar_prefetch = 0 : i64, scratch_operands = 0 : i64, tpu.core_type = #tpu.core_type<tc>, window_params = [{transform_indices = @transform_0, window_bounds = array<i64: 1, 100, 256>}, {transform_indices = @transform_1, window_bounds = array<i64: 1, 100, 1>}, {transform_indices = @transform_2, window_bounds = array<i64: 1, 100, 256>}]} {
    %c0 = arith.constant 0 : index
    %c0_0 = arith.constant 0 : index
    %c0_1 = arith.constant 0 : index
    %0 = vector.load %arg2[%c0, %c0_0, %c0_1] : memref<1x100x1xi32, #tpu.memory_space<vmem>>, vector<1x100x1xi32>
    %1 = vector.shape_cast %0 : vector<1x100x1xi32> to vector<1x100xi32>
    %2 = tpu.iota {dimensions = array<i32: 2>} : vector<1x100x100xi32>
    %3 = vector.shape_cast %1 : vector<1x100xi32> to vector<1x100x1xi32>
    %4 = vector.broadcast %3 : vector<1x100x1xi32> to vector<1x100x100xi32>
    %5 = arith.cmpi eq, %4, %2 : vector<1x100x100xi32>
    %6 = arith.extui %5 : vector<1x100x100xi1> to vector<1x100x100xi32>
    %7 = arith.sitofp %6 : vector<1x100x100xi32> to vector<1x100x100xf32>
    %8 = arith.truncf %7 : vector<1x100x100xf32> to vector<1x100x100xbf16>
    %c0_2 = arith.constant 0 : index
    %c0_3 = arith.constant 0 : index
    %c0_4 = arith.constant 0 : index
    %9 = vector.load %arg1[%c0_2, %c0_3, %c0_4] : memref<1x100x256xbf16, #tpu.memory_space<vmem>>, vector<1x100x256xbf16>
    "tpu.trace_start"() <{level = 10 : i32, message = "bij,bjc->bic"}> : () -> ()
    %cst = arith.constant dense<0.000000e+00> : vector<1x100x256xf32>
    %10 = tpu.matmul %8, %9, %cst {dimension_numbers = #tpu.dot_dimension_numbers<[2], [1], [1], [2], [0, 0, 0, 1, 1, 2], [0], [0]>} : vector<1x100x100xbf16>, vector<1x100x256xbf16>, vector<1x100x256xf32> -> vector<1x100x256xf32>
    "tpu.trace_stop"() : () -> ()
    %c0_5 = arith.constant 0 : index
    %c0_6 = arith.constant 0 : index
    %c0_7 = arith.constant 0 : index
    %11 = vector.load %arg3[%c0_5, %c0_6, %c0_7] : memref<1x100x256xf32, #tpu.memory_space<vmem>>, vector<1x100x256xf32>
    tpu.vector_store %arg3[%c0_5, %c0_6, %c0_7], %10 {strides = array<i32>} : memref<1x100x256xf32, #tpu.memory_space<vmem>>, vector<1x100x256xf32>,
    return
  }
  func.func @transform_0(%arg0: i32) -> (i32, i32, i32) {
    %c0_i32 = arith.constant 0 : i32
    %c0_i32_0 = arith.constant 0 : i32
    %c0_i32_1 = arith.constant 0 : i32
    return %arg0, %c0_i32, %c0_i32_0 : i32, i32, i32
  }
  func.func @transform_1(%arg0: i32) -> (i32, i32, i32) {
    %c0_i32 = arith.constant 0 : i32
    %c0_i32_0 = arith.constant 0 : i32
    %c0_i32_1 = arith.constant 0 : i32
    return %arg0, %c0_i32, %c0_i32_0 : i32, i32, i32
  }
  func.func @transform_2(%arg0: i32) -> (i32, i32, i32) {
    %c0_i32 = arith.constant 0 : i32
    %c0_i32_0 = arith.constant 0 : i32
    %c0_i32_1 = arith.constant 0 : i32
    return %arg0, %c0_i32, %c0_i32_0 : i32, i32, i32
  }
}

</mosaic_0001>

<llo_original>
// kernel: tpu_custom_call.1
$region0: #{tpu_custom_call.1}
  #allocation0 [shape = 'u32[]', space=smem, size = 0x4, offset = 0x4, fixed_abs, tag = 'smem constant byte address 0x4 - core index']
  #allocation1 [shape = 'u32[144,128]{1,0:T(1,128)}', space=vmem, size = 0x12000, scoped, tag = 'internal scratch']
  %s0 = inlined_call_operand.vmem [shape: bf16[2,100,256], index: 0, kind: input, shape index: {}]
  %s1 = inlined_call_operand.vmem [shape: s32[2,100,1], index: 1, kind: input, shape index: {}]
  %s2 = inlined_call_operand.vmem [shape: f32[2,100,256], index: 2, kind: output, shape index: {}]
  %s3 = sld [smem:[#allocation0]]
  $region41: #{tpu_custom_call.1} parent=0
    _
  %s5 = ssub.s32 1, %s3
  %s6 = scalar_select 0, %s5, %s3
  loop: start=0, step=1, limit=4
  $region2: #{tpu_custom_call.1} parent=0 // loop_pre_header
    _
  $region3: #{tpu_custom_call.1} parent=0 // loop_header
    %s8 = sphi 0, %s12
    %p9 = scmp.ge.s32.totalorder %s8, 4
    %s18 = sphi 0, %s20
    %s21 = sphi 0, %s18
    %s22 = sphi 0, %s21
    %s38 = sphi 0, %s22
    %s44 = sphi 0, %s46
    %s47 = sphi 0, %s44
    %s48 = sphi 0, %s47
    %s64 = sphi 0, %s48
    %s70 = sphi 0, %s72
    %s73 = sphi 0, %s70
    %s74 = sphi 0, %s73
    %s90 = sphi 0, %s74
  $region4: #{tpu_custom_call.1} parent=0 // loop_header_branch
    %11 = sbr.rel (%p9) target = $region8
  $region5: #{tpu_custom_call.1} parent=0 // loop_body
    %s13 = ssub.s32 %s8, 1
    %s14 = ssub.s32 %s8, 2
    %s15 = sadd.s32 %s8, 1
    %s16 = ssub.s32 %s8, %s15
    %p17 = scmp.eq.s32.totalorder %s16, 0
    %s19 = sadd.s32 %s18, 1
    %s20 = scalar_select %p17, %s18, %s19
    %p23 = pneg %p17
    %p24 = scmp.eq.s32.totalorder %s8, 1
    %p25 = por %p23, %p24
    %p26 = scmp.ne.s32.totalorder %s18, %s21
    %p27 = scmp.eq.s32.totalorder %s8, 0
    %p28 = por %p26, %p27
    %p29 = scmp.ne.s32.totalorder %s18, %s21
    %p30 = scmp.eq.s32.totalorder %s13, 1
    %p31 = por %p29, %p30
    %p32 = scmp.ne.s32.totalorder %s21, %s22
    %p33 = scmp.eq.s32.totalorder %s13, 0
    %p34 = por %p32, %p33
    %p35 = scmp.ne.s32.totalorder %s21, %s22
    %p36 = scmp.eq.s32.totalorder %s14, 1
    %p37 = por %p35, %p36
    %p39 = scmp.ne.s32.totalorder %s22, %s38
    %p40 = scmp.eq.s32.totalorder %s14, 0
    %p41 = por %p39, %p40
    %s42 = ssub.s32 %s8, %s15
    %p43 = scmp.eq.s32.totalorder %s42, 0
    %s45 = sadd.s32 %s44, 1
    %s46 = scalar_select %p43, %s44, %s45
    %p49 = pneg %p43
    %p50 = scmp.eq.s32.totalorder %s8, 1
    %p51 = por %p49, %p50
    %p52 = scmp.ne.s32.totalorder %s44, %s47
    %p53 = scmp.eq.s32.totalorder %s8, 0
    %p54 = por %p52, %p53
    %p55 = scmp.ne.s32.totalorder %s44, %s47
    %p56 = scmp.eq.s32.totalorder %s13, 1
    %p57 = por %p55, %p56
    %p58 = scmp.ne.s32.totalorder %s47, %s48
    %p59 = scmp.eq.s32.totalorder %s13, 0
    %p60 = por %p58, %p59
    %p61 = scmp.ne.s32.totalorder %s47, %s48
    %p62 = scmp.eq.s32.totalorder %s14, 1
    %p63 = por %p61, %p62
    %p65 = scmp.ne.s32.totalorder %s48, %s64
    %p66 = scmp.eq.s32.totalorder %s14, 0
    %p67 = por %p65, %p66
    %s68 = ssub.s32 %s8, %s15
    %p69 = scmp.eq.s32.totalorder %s68, 0
    %s71 = sadd.s32 %s70, 1
    %s72 = scalar_select %p69, %s70, %s71
    %p75 = pneg %p69
    %p76 = scmp.eq.s32.totalorder %s8, 1
    %p77 = por %p75, %p76
    %p78 = scmp.ne.s32.totalorder %s70, %s73
    %p79 = scmp.eq.s32.totalorder %s8, 0
    %p80 = por %p78, %p79
    %p81 = scmp.ne.s32.totalorder %s70, %s73
    %p82 = scmp.eq.s32.totalorder %s13, 1
    %p83 = por %p81, %p82
    %p84 = scmp.ne.s32.totalorder %s73, %s74
    %p85 = scmp.eq.s32.totalorder %s13, 0
    %p86 = por %p84, %p85
    %p87 = scmp.ne.s32.totalorder %s73, %s74
    %p88 = scmp.eq.s32.totalorder %s14, 1
    %p89 = por %p87, %p88
    %p91 = scmp.ne.s32.totalorder %s74, %s90
    %p92 = scmp.eq.s32.totalorder %s14, 0
    %p93 = por %p91, %p92
    %p94 = scmp.le.s32.totalorder 1, %s8
    %p95 = scmp.lt.s32.totalorder %s8, 3
    %p96 = pnand %p94, %p95
    %p97 = pneg %p96
    // Predicated region
    $region9: #{tpu_custom_call.1} parent=5 // pred_check
      _
    $region10: #{tpu_custom_call.1} parent=5 // pred_check_branch
      %99 = sbr.rel (%p96) target = $region12
    $region11: #{tpu_custom_call.1} parent=5 // pred_region
      %s100 = ssub.s32 %s8, 1
    $region12: #{tpu_custom_call.1} parent=5 // pred_fallthru
      _
    %p101 = scmp.lt.s32.totalorder %s8, 2
    // Predicated region
    $region13: #{tpu_custom_call.1} parent=5 // pred_check
      %p102 = pneg %p101
    $region14: #{tpu_custom_call.1} parent=5 // pred_check_branch
      %104 = sbr.rel (%p102) target = $region16
    $region15: #{tpu_custom_call.1} parent=5 // pred_region
      // Predicated region
      $region17: #{tpu_custom_call.1} parent=15 // pred_check
        %p105 = pneg %p28
      $region18: #{tpu_custom_call.1} parent=15 // pred_check_branch
        %107 = sbr.rel (%p105) target = $region20
      $region19: #{tpu_custom_call.1} parent=15 // pred_region
        %p108 = scmp.lt.s32.totalorder %s8, 1
        %s109 = scalar_select %p108, %s8, 1
        %s110 = smul.addr %s109, 26
        %s111 = smul.addr %s110, 4
        %s112 = scalar_lea.vmem %s0, %s111
      $region20: #{tpu_custom_call.1} parent=15 // pred_fallthru
        _
      // Predicated region
      $region21: #{tpu_custom_call.1} parent=15 // pred_check
        %p113 = pneg %p54
      $region22: #{tpu_custom_call.1} parent=15 // pred_check_branch
        %115 = sbr.rel (%p113) target = $region24
      $region23: #{tpu_custom_call.1} parent=15 // pred_region
        %p116 = scmp.lt.s32.totalorder %s8, 1
        %s117 = scalar_select %p116, %s8, 1
        %s118 = smul.addr %s117, 13
        %s119 = smul.addr %s118, 8
        %s120 = scalar_lea.vmem %s1, %s119
      $region24: #{tpu_custom_call.1} parent=15 // pred_fallthru
        _
    $region16: #{tpu_custom_call.1} parent=5 // pred_fallthru
      _
    %p121 = scmp.le.s32.totalorder 1, %s8
    %p122 = scmp.lt.s32.totalorder %s8, 3
    %p123 = pnand %p121, %p122
    %p124 = pneg %p123
    // Predicated region
    $region25: #{tpu_custom_call.1} parent=5 // pred_check
      _
    $region26: #{tpu_custom_call.1} parent=5 // pred_check_branch
      %126 = sbr.rel (%p123) target = $region28
    $region27: #{tpu_custom_call.1} parent=5 // pred_region
      %s127 = ssub.s32 %s8, 1
      %p128 = scmp.lt.s32.totalorder %s13, 1
      %s129 = scalar_select %p128, %s13, 1
      %s130 = smul.addr %s129, 26
      %s131 = smul.addr %s130, 4
      %s132 = scalar_lea.vmem %s0, %s131
      %p133 = pneg %p34
      %p134 = pneg %p31
      %p135 = scmp.lt.s32.totalorder %s13, 1
      %s136 = scalar_select %p135, %s13, 1
      %s137 = smul.addr %s136, 13
      %s138 = smul.addr %s137, 8
      %s139 = scalar_lea.vmem %s1, %s138
      %p140 = pneg %p60
      %p141 = pneg %p57
      %p142 = pneg %p86
      %p143 = pneg %p83
      %p144 = scmp.lt.s32.totalorder %s13, 1
      %s145 = scalar_select %p144, %s13, 1
      %s146 = smul.addr %s145, 26
      %s147 = smul.addr %s146, 8
      %s148 = scalar_lea.vmem %s2, %s147
      %p149 = scmp.lt.s32.totalorder %s13, 1
      %s150 = scalar_select %p149, %s13, 1
      %s151 = smul.addr %s150, 26
      %s152 = smul.addr %s151, 4
      %s153 = scalar_lea.vmem %s0, %s152
      %p154 = scmp.lt.s32.totalorder %s13, 1
      %s155 = scalar_select %p154, %s13, 1
      %s156 = smul.addr %s155, 13
      %s157 = smul.addr %s156, 8
      %s158 = scalar_lea.vmem %s1, %s157
      %p159 = scmp.lt.s32.totalorder %s13, 1
      %s160 = scalar_select %p159, %s13, 1
      %s161 = smul.addr %s160, 26
      %s162 = smul.addr %s161, 8
      %s163 = scalar_lea.vmem %s2, %s162
      %v165 = vld [vmem:[%s158] sm:$0xff]
      %v166 = vld [vmem:[%s158 + $0x8] sm:$0xff]
      %v167 = vld [vmem:[%s158 + $0x10] sm:$0xff]
      %v168 = vld [vmem:[%s158 + $0x18] sm:$0xff]
      %v169 = vld [vmem:[%s158 + $0x20] sm:$0xff]
      %v170 = vld [vmem:[%s158 + $0x28] sm:$0xff]
      %v171 = vld [vmem:[%s158 + $0x30] sm:$0xff]
      %v172 = vld [vmem:[%s158 + $0x38] sm:$0xff]
      %v173 = vld [vmem:[%s158 + $0x40] sm:$0xff]
      %v174 = vld [vmem:[%s158 + $0x48] sm:$0xff]
      %v175 = vld [vmem:[%s158 + $0x50] sm:$0xff]
      %v176 = vld [vmem:[%s158 + $0x58] sm:$0xff]
      %v177 = vld [vmem:[%s158 + $0x60] sm:$0xf]
      %v178 = vlaneseq
      %v179 = vand.u32 %v178, 127
      %180 = vset.pattern.permute.xlu0 0
      %181 = vperm.xlu0 %180, %v165
      %v182 = vpop.permute.xlu0 %181
      %183 = vset.pattern.permute.xlu0 0
      %184 = vperm.xlu0 %183, %v166
      %v185 = vpop.permute.xlu0 %184
      %186 = vset.pattern.permute.xlu0 0
      %187 = vperm.xlu0 %186, %v167
      %v188 = vpop.permute.xlu0 %187
      %189 = vset.pattern.permute.xlu0 0
      %190 = vperm.xlu0 %189, %v168
      %v191 = vpop.permute.xlu0 %190
      %192 = vset.pattern.permute.xlu0 0
      %193 = vperm.xlu0 %192, %v169
      %v194 = vpop.permute.xlu0 %193
      %195 = vset.pattern.permute.xlu0 0
      %196 = vperm.xlu0 %195, %v170
      %v197 = vpop.permute.xlu0 %196
      %198 = vset.pattern.permute.xlu0 0
      %199 = vperm.xlu0 %198, %v171
      %v200 = vpop.permute.xlu0 %199
      %201 = vset.pattern.permute.xlu0 0
      %202 = vperm.xlu0 %201, %v172
      %v203 = vpop.permute.xlu0 %202
      %204 = vset.pattern.permute.xlu0 0
      %205 = vperm.xlu0 %204, %v173
      %v206 = vpop.permute.xlu0 %205
      %207 = vset.pattern.permute.xlu0 0
      %208 = vperm.xlu0 %207, %v174
      %v209 = vpop.permute.xlu0 %208
      %210 = vset.pattern.permute.xlu0 0
      %211 = vperm.xlu0 %210, %v175
      %v212 = vpop.permute.xlu0 %211
      %213 = vset.pattern.permute.xlu0 0
      %214 = vperm.xlu0 %213, %v176
      %v215 = vpop.permute.xlu0 %214
      %216 = vset.pattern.permute.xlu0 0
      %217 = vperm.xlu0 %216, %v177
      %v218 = vpop.permute.xlu0 %217
      %vm219 = vcmp.eq.s32.totalorder %v182, %v179
      %vm220 = vcmp.eq.s32.totalorder %v185, %v179
      %vm221 = vcmp.eq.s32.totalorder %v188, %v179
      %vm222 = vcmp.eq.s32.totalorder %v191, %v179
      %vm223 = vcmp.eq.s32.totalorder %v194, %v179
      %vm224 = vcmp.eq.s32.totalorder %v197, %v179
      %vm225 = vcmp.eq.s32.totalorder %v200, %v179
      %vm226 = vcmp.eq.s32.totalorder %v203, %v179
      %vm227 = vcmp.eq.s32.totalorder %v206, %v179
      %vm228 = vcmp.eq.s32.totalorder %v209, %v179
      %vm229 = vcmp.eq.s32.totalorder %v212, %v179
      %vm230 = vcmp.eq.s32.totalorder %v215, %v179
      %vm231 = vcmp.eq.s32.totalorder %v218, %v179
      %v232 = vsel %vm219, 1, 0
      %v233 = vsel %vm220, 1, 0
      %v234 = vsel %vm221, 1, 0
      %v235 = vsel %vm222, 1, 0
      %v236 = vsel %vm223, 1, 0
      %v237 = vsel %vm224, 1, 0
      %v238 = vsel %vm225, 1, 0
      %v239 = vsel %vm226, 1, 0
      %v240 = vsel %vm227, 1, 0
      %v241 = vsel %vm228, 1, 0
      %v242 = vsel %vm229, 1, 0
      %v243 = vsel %vm230, 1, 0
      %v244 = vsel %vm231, 1, 0
      %v245 = vcvt.s32.f32 %v232
      %v246 = vcvt.s32.f32 %v233
      %v247 = vcvt.s32.f32 %v234
      %v248 = vcvt.s32.f32 %v235
      %v249 = vcvt.s32.f32 %v236
      %v250 = vcvt.s32.f32 %v237
      %v251 = vcvt.s32.f32 %v238
      %v252 = vcvt.s32.f32 %v239
      %v253 = vcvt.s32.f32 %v240
      %v254 = vcvt.s32.f32 %v241
      %v255 = vcvt.s32.f32 %v242
      %v256 = vcvt.s32.f32 %v243
      %v257 = vcvt.s32.f32 %v244
      %v258 = vpack.c.bf16 %v246, %v245
      %v259 = vpack.c.bf16 %v248, %v247
      %v260 = vpack.c.bf16 %v250, %v249
      %v261 = vpack.c.bf16 %v252, %v251
      %v262 = vpack.c.bf16 %v254, %v253
      %v263 = vpack.c.bf16 %v256, %v255
      %v264 = vpack.c.bf16 %v257, %v257
      %v265 = vld [vmem:[%s153] sm:$0xff]
      %v266 = vld [vmem:[%s153 + $0x8] sm:$0xff]
      %v267 = vld [vmem:[%s153 + $0x10] sm:$0xff]
      %v268 = vld [vmem:[%s153 + $0x18] sm:$0xff]
      %v269 = vld [vmem:[%s153 + $0x20] sm:$0xff]
      %v270 = vld [vmem:[%s153 + $0x28] sm:$0xff]
      %v271 = vld [vmem:[%s153 + $0x30] sm:$0xff]
      %v272 = vld [vmem:[%s153 + $0x38] sm:$0xff]
      %v273 = vld [vmem:[%s153 + $0x40] sm:$0xff]
      %v274 = vld [vmem:[%s153 + $0x48] sm:$0xff]
      %v275 = vld [vmem:[%s153 + $0x50] sm:$0xff]
      %v276 = vld [vmem:[%s153 + $0x58] sm:$0xff]
      %v277 = vld [vmem:[%s153 + $0x60] sm:$0x33]
      %v291 = vunpack.c.l.b16 %v265
      %v292 = vunpack.c.h.b16 %v265
      %v293 = vunpack.c.l.b16 %v266
      %v294 = vunpack.c.h.b16 %v266
      %v295 = vunpack.c.l.b16 %v267
      %v296 = vunpack.c.h.b16 %v267
      %v297 = vunpack.c.l.b16 %v268
      %v298 = vunpack.c.h.b16 %v268
      %v299 = vunpack.c.l.b16 %v269
      %v300 = vunpack.c.h.b16 %v269
      %v301 = vunpack.c.l.b16 %v270
      %v302 = vunpack.c.h.b16 %v270
      %v303 = vunpack.c.l.b16 %v271
      %v304 = vunpack.c.h.b16 %v271
      %v305 = vunpack.c.l.b16 %v272
      %v306 = vunpack.c.h.b16 %v272
      %v307 = vunpack.c.l.b16 %v273
      %v308 = vunpack.c.h.b16 %v273
      %v309 = vunpack.c.l.b16 %v274
      %v310 = vunpack.c.h.b16 %v274
      %v311 = vunpack.c.l.b16 %v275
      %v312 = vunpack.c.h.b16 %v275
      %v313 = vunpack.c.l.b16 %v276
      %v314 = vunpack.c.h.b16 %v276
      %v315 = vunpack.c.l.b16 %v277
      %v316 = vunpack.c.h.b16 %v277
      %v317 = vpack.c.b16 %v293, %v291
      %v318 = vpack.c.b16 %v294, %v292
      %v319 = vpack.c.b16 %v297, %v295
      %v320 = vpack.c.b16 %v298, %v296
      %v321 = vpack.c.b16 %v301, %v299
      %v322 = vpack.c.b16 %v302, %v300
      %v323 = vpack.c.b16 %v305, %v303
      %v324 = vpack.c.b16 %v306, %v304
      %v325 = vpack.c.b16 %v309, %v307
      %v326 = vpack.c.b16 %v310, %v308
      %v327 = vpack.c.b16 %v313, %v311
      %v328 = vpack.c.b16 %v314, %v312
      %v329 = vpack.c.b16 %v315, %v315
      %v330 = vpack.c.b16 %v316, %v316
      %vm343 = vcmask 818176
      %v345 = vsel %vm343, %v258, 0
      %v348 = vsel %vm343, %v259, 0
      %v351 = vsel %vm343, %v260, 0
      %v354 = vsel %vm343, %v261, 0
      %v357 = vsel %vm343, %v262, 0
      %v360 = vsel %vm343, %v263, 0
      %v363 = vsel %vm343, %v264, 0
      %vm365 = vcmask 1041408
      %v367 = vsel %vm365, %v329, 0
      %v370 = vsel %vm365, %v330, 0
      %372 = vmatprep.subr.bf16.mxu0 %v318
      %373 = vmatpush1.bf16.msra.mxu0 %v317
      %374 = vmatprep.subr.bf16.mxu0 %v320
      %375 = vmatpush1.bf16.msra.mxu0 %v319
      %376 = vmatprep.subr.bf16.mxu0 %v322
      %377 = vmatpush1.bf16.msra.mxu0 %v321
      %378 = vmatprep.subr.bf16.mxu0 %v324
      %379 = vmatpush1.bf16.msra.mxu0 %v323
      %380 = vmatprep.subr.bf16.mxu0 %v326
      %381 = vmatpush1.bf16.msra.mxu0 %v325
      %382 = vmatprep.subr.bf16.mxu0 %v328
      %383 = vmatpush1.bf16.msra.mxu0 %v327
      %384 = vmatprep.subr.bf16.mxu0 %v370
      %385 = vmatpush1.bf16.msra.mxu0 %v367
      %386 = vmatprep.subr.bf16.mxu0 0
      %387 = vmatpush1.bf16.msra.mxu0 0
      %388 = vmatprep.subr.bf16.mxu0 0
      %389 = vmatpush1.bf16.msra.mxu0 0
      %390 = vmatprep.subr.bf16.mxu0 0
      %391 = vmatpush1.bf16.msra.mxu0 0
      %392 = vmatprep.subr.bf16.mxu0 0
      %393 = vmatpush1.bf16.msra.mxu0 0
      %394 = vmatprep.subr.bf16.mxu0 0
      %395 = vmatpush1.bf16.msra.mxu0 0
      %396 = vmatprep.subr.bf16.mxu0 0
      %397 = vmatpush1.bf16.msra.mxu0 0
      %398 = vmatprep.subr.bf16.mxu0 0
      %399 = vmatpush1.bf16.msra.mxu0 0
      %400 = vmatprep.subr.bf16.mxu0 0
      %401 = vmatpush1.bf16.msra.mxu0 0
      %402 = vmatprep.subr.bf16.mxu0 0
      %403 = vmatpush1.bf16.msra.mxu0 0
      %404 = vmatprep.mubr.bf16.mxu0 0
      %405 = vmatmul.mubr.bf16.gmra.mrb[0].mxu0 %v345
      %v406 = vpop.f32.mrb[0].mxu0
      %v407 = vadd.f32 0.0, %v406
      %v408 = vpop.f32.mrb[0].mxu0
      %v409 = vadd.f32 0.0, %v408
      %v410 = vpop.f32.mrb[0].mxu0
      %v411 = vadd.f32 0.0, %v410
      %v412 = vpop.f32.mrb[0].mxu0
      %v413 = vadd.f32 0.0, %v412
      %414 = vmatprep.mubr.bf16.mxu0 0
      %415 = vmatmul.mubr.bf16.gmra.mrb[0].mxu0 %v348
      %v416 = vpop.f32.mrb[0].mxu0
      %v417 = vadd.f32 0.0, %v416
      %v418 = vpop.f32.mrb[0].mxu0
      %v419 = vadd.f32 0.0, %v418
      %v420 = vpop.f32.mrb[0].mxu0
      %v421 = vadd.f32 0.0, %v420
      %v422 = vpop.f32.mrb[0].mxu0
      %v423 = vadd.f32 0.0, %v422
      %424 = vmatprep.mubr.bf16.mxu0 0
      %425 = vmatmul.mubr.bf16.gmra.mrb[0].mxu0 %v351
      %v426 = vpop.f32.mrb[0].mxu0
      %v427 = vadd.f32 0.0, %v426
      %v428 = vpop.f32.mrb[0].mxu0
      %v429 = vadd.f32 0.0, %v428
      %v430 = vpop.f32.mrb[0].mxu0
      %v431 = vadd.f32 0.0, %v430
      %v432 = vpop.f32.mrb[0].mxu0
      %v433 = vadd.f32 0.0, %v432
      %434 = vmatprep.mubr.bf16.mxu0 0
      %435 = vmatmul.mubr.bf16.gmra.mrb[0].mxu0 %v354
      %v436 = vpop.f32.mrb[0].mxu0
      %v437 = vadd.f32 0.0, %v436
      %v438 = vpop.f32.mrb[0].mxu0
      %v439 = vadd.f32 0.0, %v438
      %v440 = vpop.f32.mrb[0].mxu0
      %v441 = vadd.f32 0.0, %v440
      %v442 = vpop.f32.mrb[0].mxu0
      %v443 = vadd.f32 0.0, %v442
      %444 = vmatprep.mubr.bf16.mxu0 0
      %445 = vmatmul.mubr.bf16.gmra.mrb[0].mxu0 %v357
      %v446 = vpop.f32.mrb[0].mxu0
      %v447 = vadd.f32 0.0, %v446
      %v448 = vpop.f32.mrb[0].mxu0
      %v449 = vadd.f32 0.0, %v448
      %v450 = vpop.f32.mrb[0].mxu0
      %v451 = vadd.f32 0.0, %v450
      %v452 = vpop.f32.mrb[0].mxu0
      %v453 = vadd.f32 0.0, %v452
      %454 = vmatprep.mubr.bf16.mxu0 0
      %455 = vmatmul.mubr.bf16.gmra.mrb[0].mxu0 %v360
      %v456 = vpop.f32.mrb[0].mxu0
      %v457 = vadd.f32 0.0, %v456
      %v458 = vpop.f32.mrb[0].mxu0
      %v459 = vadd.f32 0.0, %v458
      %v460 = vpop.f32.mrb[0].mxu0
      %v461 = vadd.f32 0.0, %v460
      %v462 = vpop.f32.mrb[0].mxu0
      %v463 = vadd.f32 0.0, %v462
      %464 = vmatprep.mubr.bf16.mxu0 0
      %465 = vmatmul.mubr.bf16.gmra.mrb[0].mxu0 %v363
      %v466 = vpop.f32.mrb[0].mxu0
      %v467 = vadd.f32 0.0, %v466
      %v468 = vpop.f32.mrb[0].mxu0
      %v469 = vadd.f32 0.0, %v468
      %v470 = vpop.f32.mrb[0].mxu0
      %v471 = vpop.f32.mrb[0].mxu0
      %472 = vdwg.mxu0
      %473 = vst [vmem:[%s163] sm:$0xff] %v407
      %474 = vst [vmem:[%s163 + $0x8] sm:$0xff] %v409
      %475 = vst [vmem:[%s163 + $0x10] sm:$0xff] %v411
      %476 = vst [vmem:[%s163 + $0x18] sm:$0xff] %v413
      %477 = vst [vmem:[%s163 + $0x20] sm:$0xff] %v417
      %478 = vst [vmem:[%s163 + $0x28] sm:$0xff] %v419
      %479 = vst [vmem:[%s163 + $0x30] sm:$0xff] %v421
      %480 = vst [vmem:[%s163 + $0x38] sm:$0xff] %v423
      %481 = vst [vmem:[%s163 + $0x40] sm:$0xff] %v427
      %482 = vst [vmem:[%s163 + $0x48] sm:$0xff] %v429
      %483 = vst [vmem:[%s163 + $0x50] sm:$0xff] %v431
      %484 = vst [vmem:[%s163 + $0x58] sm:$0xff] %v433
      %485 = vst [vmem:[%s163 + $0x60] sm:$0xff] %v437
      %486 = vst [vmem:[%s163 + $0x68] sm:$0xff] %v439
      %487 = vst [vmem:[%s163 + $0x70] sm:$0xff] %v441
      %488 = vst [vmem:[%s163 + $0x78] sm:$0xff] %v443
      %489 = vst [vmem:[%s163 + $0x80] sm:$0xff] %v447
      %490 = vst [vmem:[%s163 + $0x88] sm:$0xff] %v449
      %491 = vst [vmem:[%s163 + $0x90] sm:$0xff] %v451
      %492 = vst [vmem:[%s163 + $0x98] sm:$0xff] %v453
      %493 = vst [vmem:[%s163 + $0xa0] sm:$0xff] %v457
      %494 = vst [vmem:[%s163 + $0xa8] sm:$0xff] %v459
      %495 = vst [vmem:[%s163 + $0xb0] sm:$0xff] %v461
      %496 = vst [vmem:[%s163 + $0xb8] sm:$0xff] %v463
      %497 = vst [vmem:[%s163 + $0xc0] sm:$0xf] %v467
      %498 = vst [vmem:[%s163 + $0xc8] sm:$0xf] %v469
      %p499 = scmp.lt.s32.totalorder %s13, 1
      %s500 = scalar_select %p499, %s13, 1
      %s501 = smul.addr %s500, 26
      %s502 = smul.addr %s501, 8
      %s503 = scalar_lea.vmem %s2, %s502
      // Predicated region
      $region29: #{tpu_custom_call.1} parent=27 // pred_check
        %p504 = pneg %p83
      $region30: #{tpu_custom_call.1} parent=27 // pred_check_branch
        %506 = sbr.rel (%p504) target = $region32
      $region31: #{tpu_custom_call.1} parent=27 // pred_region
        _
      $region32: #{tpu_custom_call.1} parent=27 // pred_fallthru
        _
    $region28: #{tpu_custom_call.1} parent=5 // pred_fallthru
      _
    %p507 = scmp.le.s32.totalorder 2, %s8
    // Predicated region
    $region33: #{tpu_custom_call.1} parent=5 // pred_check
      %p508 = pneg %p507
    $region34: #{tpu_custom_call.1} parent=5 // pred_check_branch
      %510 = sbr.rel (%p508) target = $region36
    $region35: #{tpu_custom_call.1} parent=5 // pred_region
      %s511 = ssub.s32 %s8, 2
      // Predicated region
      $region37: #{tpu_custom_call.1} parent=35 // pred_check
        %p512 = pneg %p89
      $region38: #{tpu_custom_call.1} parent=35 // pred_check_branch
        %514 = sbr.rel (%p512) target = $region40
      $region39: #{tpu_custom_call.1} parent=35 // pred_region
        %p515 = scmp.lt.s32.totalorder %s14, 1
        %s516 = scalar_select %p515, %s14, 1
        %s517 = smul.addr %s516, 26
        %s518 = smul.addr %s517, 8
        %s519 = scalar_lea.vmem %s2, %s518
      $region40: #{tpu_custom_call.1} parent=35 // pred_fallthru
        _
    $region36: #{tpu_custom_call.1} parent=5 // pred_fallthru
      _
  $region6: #{tpu_custom_call.1} parent=0 // loop_footer
    %s12 = sadd.s32 1, %s8
  $region7: #{tpu_custom_call.1} parent=0 // loop_footer_branch
    %7 = sbr.rel target = $region3
  $region8: #{tpu_custom_call.1} parent=0 // loop_exit
    _

</llo_original>
